<compile_context>
chip_gen: v6e
topology: v6e:2x2x1
jax: 0.10.0
libtpu: 0.0.40
codegen_flags: <defaults>
</compile_context>

<pallas_src>
import functools

import jax
import jax.numpy as jnp
from jax.experimental import pallas as pl
from jax.experimental.pallas import tpu as pltpu

LANE = 128  # TPU vreg lane width
SUBLANE = 8


def _round_up(n, m):
    return ((n + m - 1) // m) * m


def prepare_params(w1, b1, w2, b2):
    """One-time parameter packing (run at init, NOT per forward call).

    Returns:
      w1a: (F_pad, H_pad)  = [[W1, 0], [b1, 1], [0, 0]]  (bias row + const-1 lane)
      w2a: (H_pad, O_pad)  = [[W2], [b2], [0]]           (b2 in the const-1 row)
    so that  relu(x_aug @ w1a) @ w2a  ==  relu(x @ W1 + b1) @ W2 + b2
    where x_aug = [x | 1 | 0...].
    """
    F, H = w1.shape
    O = w2.shape[1]
    F_pad = _round_up(F + 1, SUBLANE)   # +1 for the ones column of x
    H_pad = _round_up(H + 1, LANE)      # +1 guarantees a spare lane for b2
    O_pad = _round_up(O, LANE)

    w1a = jnp.zeros((F_pad, H_pad), jnp.float32)
    w1a = w1a.at[:F, :H].set(w1.astype(jnp.float32))
    w1a = w1a.at[F, :H].set(b1.reshape(-1).astype(jnp.float32))
    w1a = w1a.at[F, H].set(1.0)         # hidden lane H == const 1 after relu

    w2a = jnp.zeros((H_pad, O_pad), jnp.float32)
    w2a = w2a.at[:H, :O].set(w2.astype(jnp.float32))
    w2a = w2a.at[H, :O].set(b2.reshape(-1).astype(jnp.float32))
    return w1a, w2a


def mlp_kernel(x_ref, w1_ref, w2_ref, o_ref):
    """One batch tile of y = relu(x_aug @ W1a) @ W2a.

    Both contractions ride the MXU: K = F_pad (8, zero-padded) for layer 1,
    K = H_pad (128, lane-dense) for layer 2.  Biases are already folded into
    the weight tiles, and the output store is full-lane (unmasked vst).
    """
    h = jnp.maximum(
        jnp.dot(x_ref[...], w1_ref[...], preferred_element_type=jnp.float32),
        0.0)
    y = jnp.dot(h, w2_ref[...], preferred_element_type=jnp.float32)
    o_ref[...] = y.astype(o_ref.dtype)


@functools.partial(jax.jit, static_argnames=("n_out",))
def net_forward(x, w1a, w2a, *, n_out):
    """x: (B, F) raw inputs; w1a/w2a: pre-packed params from prepare_params."""
    B, F = x.shape
    F_pad, H_pad = w1a.shape
    O_pad = w2a.shape[1]

    # --- tile selection: single grid step for small B, 512-row tiles beyond.
    B_pad = _round_up(B, SUBLANE)
    if B_pad <= 512:
        tb = B_pad                      # one step: one x DMA, one writeback
    else:
        tb = 512                        # ~85% of HBM roofline per measurements
        B_pad = _round_up(B_pad, tb)

    # --- per-call input packing: append the ones column (activates the bias
    #     row of W1a), zero-pad features to F_pad and batch to B_pad.  Padded
    #     rows are all-zero (incl. ones column) -> relu(0) -> 0 output.
    x_aug = jnp.concatenate([x.astype(jnp.float32),
                             jnp.ones((B, 1), jnp.float32)], axis=1)
    x_aug = jnp.pad(x_aug, ((0, B_pad - B), (0, F_pad - (F + 1))))

    # --- VMEM budget: double-buffered x & out tiles + resident weights,
    #     plus headroom for compiler scratch.  ~1-2 MiB at tb <= 1024.
    vmem_bytes = 4 * (2 * tb * (F_pad + O_pad)
                      + 2 * (F_pad * H_pad + H_pad * O_pad)) + (2 << 20)

    out = pl.pallas_call(
        mlp_kernel,
        out_shape=jax.ShapeDtypeStruct((B_pad, O_pad), jnp.float32),
        grid=(B_pad // tb,),
        in_specs=[
            pl.BlockSpec((tb, F_pad), lambda i: (i, 0)),      # batch tile of x
            pl.BlockSpec((F_pad, H_pad), lambda i: (0, 0)),   # W1a: resident
            pl.BlockSpec((H_pad, O_pad), lambda i: (0, 0)),   # W2a: resident
        ],
        out_specs=pl.BlockSpec((tb, O_pad), lambda i: (i, 0)),
        compiler_params=pltpu.CompilerParams(
            dimension_semantics=("parallel",),  # v7x: tiles split across 2 TCs
            vmem_limit_bytes=int(vmem_bytes),   # sized to footprint + headroom
        ),
    )(x_aug, w1a, w2a)

    return out[:B, :n_out]


def reference_forward(x, w1, b1, w2, b2):
    h = jnp.maximum(x @ w1 + b1, 0.0)
    return h @ w2 + b2


if __name__ == "__main__":
    # Net(n_feature=2, n_hidden=32, n_output=2); the script feeds 200 points
    # (two Gaussian clusters around +/-2).
    F_IN, HID, OUT = 2, 32, 2
    B = 200

    key = jax.random.PRNGKey(0)
    kx0, kx1, kw1, kb1, kw2, kb2 = jax.random.split(key, 6)

    x0 = jax.random.normal(kx0, (B // 2, F_IN), jnp.float32) + 2.0
    x1 = jax.random.normal(kx1, (B // 2, F_IN), jnp.float32) - 2.0
    x = jnp.concatenate([x0, x1], axis=0)

    # PyTorch Linear-style uniform init, weights stored as (in, out).
    bound1 = 1.0 / jnp.sqrt(jnp.float32(F_IN))
    w1 = jax.random.uniform(kw1, (F_IN, HID), jnp.float32, -bound1, bound1)
    b1 = jax.random.uniform(kb1, (1, HID), jnp.float32, -bound1, bound1)
    bound2 = 1.0 / jnp.sqrt(jnp.float32(HID))
    w2 = jax.random.uniform(kw2, (HID, OUT), jnp.float32, -bound2, bound2)
    b2 = jax.random.uniform(kb2, (1, OUT), jnp.float32, -bound2, bound2)

    # One-time parameter packing (hoisted out of the forward call).
    w1a, w2a = prepare_params(w1, b1, w2, b2)
    w1a, w2a = jax.block_until_ready((w1a, w2a))

    out = jax.block_until_ready(net_forward(x, w1a, w2a, n_out=OUT))
    ref = reference_forward(x, w1, b1, w2, b2)

    assert out.shape == (B, OUT), out.shape
    assert jnp.allclose(out, ref, atol=1e-5, rtol=1e-5)

    print("KERNEL_OK")
</pallas_src>

<mosaic_0001>
module attributes {stable_mosaic.version = 11 : i64} {
  func.func @mlp_kernel(%arg0: i32, %arg1: memref<200x8xf32, #tpu.memory_space<vmem>>, %arg2: memref<8x128xf32, #tpu.memory_space<vmem>>, %arg3: memref<128x128xf32, #tpu.memory_space<vmem>>, %arg4: memref<200x128xf32, #tpu.memory_space<vmem>>) attributes {dimension_semantics = [#tpu.dimension_semantics<parallel>], iteration_bounds = array<i64: 1>, scalar_prefetch = 0 : i64, scratch_operands = 0 : i64, tpu.core_type = #tpu.core_type<tc>, window_params = [{transform_indices = @transform_0, window_bounds = array<i64: 200, 8>}, {pipeline_mode = #tpu.pipeline_mode<synchronous>, transform_indices = @transform_1, window_bounds = array<i64: 8, 128>}, {pipeline_mode = #tpu.pipeline_mode<synchronous>, transform_indices = @transform_2, window_bounds = array<i64: 128, 128>}, {transform_indices = @transform_3, window_bounds = array<i64: 200, 128>}]} {
    %c0 = arith.constant 0 : index
    %c0_0 = arith.constant 0 : index
    %0 = vector.load %arg1[%c0, %c0_0] : memref<200x8xf32, #tpu.memory_space<vmem>>, vector<200x8xf32>
    %c0_1 = arith.constant 0 : index
    %c0_2 = arith.constant 0 : index
    %1 = vector.load %arg2[%c0_1, %c0_2] : memref<8x128xf32, #tpu.memory_space<vmem>>, vector<8x128xf32>
    %cst = arith.constant dense<0.000000e+00> : vector<200x128xf32>
    %2 = tpu.matmul %0, %1, %cst {dimension_numbers = #tpu.dot_dimension_numbers<[1], [0], [0], [1], [0, 0, 1, 1], [], []>} : vector<200x8xf32>, vector<8x128xf32>, vector<200x128xf32> -> vector<200x128xf32>
    %cst_3 = arith.constant 0.000000e+00 : f32
    %3 = vector.broadcast %cst_3 : f32 to vector<200x128xf32>
    %4 = arith.maximumf %2, %3 : vector<200x128xf32>
    %c0_4 = arith.constant 0 : index
    %c0_5 = arith.constant 0 : index
    %5 = vector.load %arg3[%c0_4, %c0_5] : memref<128x128xf32, #tpu.memory_space<vmem>>, vector<128x128xf32>
    %cst_6 = arith.constant dense<0.000000e+00> : vector<200x128xf32>
    %6 = tpu.matmul %4, %5, %cst_6 {dimension_numbers = #tpu.dot_dimension_numbers<[1], [0], [0], [1], [0, 0, 1, 1], [], []>} : vector<200x128xf32>, vector<128x128xf32>, vector<200x128xf32> -> vector<200x128xf32>
    %c0_7 = arith.constant 0 : index
    %c0_8 = arith.constant 0 : index
    %7 = vector.load %arg4[%c0_7, %c0_8] : memref<200x128xf32, #tpu.memory_space<vmem>>, vector<200x128xf32>
    tpu.vector_store %arg4[%c0_7, %c0_8], %6 {strides = array<i32>} : memref<200x128xf32, #tpu.memory_space<vmem>>, vector<200x128xf32>,
    return
  }
  func.func @transform_0(%arg0: i32) -> (i32, i32) {
    %c0_i32 = arith.constant 0 : i32
    %c0_i32_0 = arith.constant 0 : i32
    return %arg0, %c0_i32 : i32, i32
  }
  func.func @transform_1(%arg0: i32) -> (i32, i32) {
    %c0_i32 = arith.constant 0 : i32
    %c0_i32_0 = arith.constant 0 : i32
    %c0_i32_1 = arith.constant 0 : i32
    return %c0_i32, %c0_i32_0 : i32, i32
  }
  func.func @transform_2(%arg0: i32) -> (i32, i32) {
    %c0_i32 = arith.constant 0 : i32
    %c0_i32_0 = arith.constant 0 : i32
    %c0_i32_1 = arith.constant 0 : i32
    return %c0_i32, %c0_i32_0 : i32, i32
  }
  func.func @transform_3(%arg0: i32) -> (i32, i32) {
    %c0_i32 = arith.constant 0 : i32
    %c0_i32_0 = arith.constant 0 : i32
    return %arg0, %c0_i32 : i32, i32
  }
}

</mosaic_0001>

<llo_original>
// kernel: net_forward.1
$region0: #{net_forward.1}
  #allocation0 [shape = 'u32[]', space=smem, size = 0x4, offset = 0x4, fixed_abs, tag = 'smem constant byte address 0x4 - core index']
  #allocation1 [shape = 'u32[144,128]{1,0:T(1,128)}', space=vmem, size = 0x12000, scoped, tag = 'internal scratch']
  %s0 = inlined_call_operand.vmem [shape: f32[200,8], index: 0, kind: input, shape index: {}]
  %s1 = inlined_call_operand.vmem [shape: f32[8,128], index: 1, kind: input, shape index: {}]
  %s2 = inlined_call_operand.vmem [shape: f32[128,128], index: 2, kind: input, shape index: {}]
  %s3 = inlined_call_operand.vmem [shape: f32[200,128], index: 3, kind: output, shape index: {}]
  %s4 = sld [smem:[#allocation0]]
  $region22: #{net_forward.1} parent=0
    _
  %s6 = ssub.s32 1, %s4
  %s7 = scalar_select 0, %s6, %s4
  // Predicated region
  $region2: #{net_forward.1} parent=0 // pred_check
    _
  $region3: #{net_forward.1} parent=0 // pred_check_branch
    %9 = sbr.rel (0) target = $region5
  $region4: #{net_forward.1} parent=0 // pred_region
    _
  $region5: #{net_forward.1} parent=0 // pred_fallthru
    _
  // Predicated region
  $region6: #{net_forward.1} parent=0 // pred_check
    _
  $region7: #{net_forward.1} parent=0 // pred_check_branch
    %11 = sbr.rel (0) target = $region9
  $region8: #{net_forward.1} parent=0 // pred_region
    _
  $region9: #{net_forward.1} parent=0 // pred_fallthru
    _
  // Predicated region
  $region10: #{net_forward.1} parent=0 // pred_check
    _
  $region11: #{net_forward.1} parent=0 // pred_check_branch
    %13 = sbr.rel (0) target = $region13
  $region12: #{net_forward.1} parent=0 // pred_region
    _
  $region13: #{net_forward.1} parent=0 // pred_fallthru
    _
  %v14 = vld [vmem:[%s0] sm:$0xff]
  %v15 = vld [vmem:[%s0 + $0x8] sm:$0xff]
  %v16 = vld [vmem:[%s0 + $0x10] sm:$0xff]
  %v17 = vld [vmem:[%s0 + $0x18] sm:$0xff]
  %v18 = vld [vmem:[%s0 + $0x20] sm:$0xff]
  %v19 = vld [vmem:[%s0 + $0x28] sm:$0xff]
  %v20 = vld [vmem:[%s0 + $0x30] sm:$0xff]
  %v21 = vld [vmem:[%s0 + $0x38] sm:$0xff]
  %v22 = vld [vmem:[%s0 + $0x40] sm:$0xff]
  %v23 = vld [vmem:[%s0 + $0x48] sm:$0xff]
  %v24 = vld [vmem:[%s0 + $0x50] sm:$0xff]
  %v25 = vld [vmem:[%s0 + $0x58] sm:$0xff]
  %v26 = vld [vmem:[%s0 + $0x60] sm:$0xff]
  %v27 = vld [vmem:[%s0 + $0x68] sm:$0xff]
  %v28 = vld [vmem:[%s0 + $0x70] sm:$0xff]
  %v29 = vld [vmem:[%s0 + $0x78] sm:$0xff]
  %v30 = vld [vmem:[%s0 + $0x80] sm:$0xff]
  %v31 = vld [vmem:[%s0 + $0x88] sm:$0xff]
  %v32 = vld [vmem:[%s0 + $0x90] sm:$0xff]
  %v33 = vld [vmem:[%s0 + $0x98] sm:$0xff]
  %v34 = vld [vmem:[%s0 + $0xa0] sm:$0xff]
  %v35 = vld [vmem:[%s0 + $0xa8] sm:$0xff]
  %v36 = vld [vmem:[%s0 + $0xb0] sm:$0xff]
  %v37 = vld [vmem:[%s0 + $0xb8] sm:$0xff]
  %v38 = vld [vmem:[%s0 + $0xc0] sm:$0xff]
  %v39 = vld [vmem:[%s1] sm:$0xff]
  %vm40 = vcmask 64512
  %v42 = vsel %vm40, %v14, 0
  %v45 = vsel %vm40, %v15, 0
  %v48 = vsel %vm40, %v16, 0
  %v51 = vsel %vm40, %v17, 0
  %v54 = vsel %vm40, %v18, 0
  %v57 = vsel %vm40, %v19, 0
  %v60 = vsel %vm40, %v20, 0
  %v63 = vsel %vm40, %v21, 0
  %v66 = vsel %vm40, %v22, 0
  %v69 = vsel %vm40, %v23, 0
  %v72 = vsel %vm40, %v24, 0
  %v75 = vsel %vm40, %v25, 0
  %v78 = vsel %vm40, %v26, 0
  %v81 = vsel %vm40, %v27, 0
  %v84 = vsel %vm40, %v28, 0
  %v87 = vsel %vm40, %v29, 0
  %v90 = vsel %vm40, %v30, 0
  %v93 = vsel %vm40, %v31, 0
  %v96 = vsel %vm40, %v32, 0
  %v99 = vsel %vm40, %v33, 0
  %v102 = vsel %vm40, %v34, 0
  %v105 = vsel %vm40, %v35, 0
  %v108 = vsel %vm40, %v36, 0
  %v111 = vsel %vm40, %v37, 0
  %v114 = vsel %vm40, %v38, 0
  %116 = vmatprep.subr.mxu0 0.0
  %117 = vmatpush1.msra.mxu0 0.0
  %118 = vmatprep.subr.mxu0 0.0
  %119 = vmatpush1.msra.mxu0 0.0
  %120 = vmatprep.subr.mxu0 0.0
  %121 = vmatpush1.msra.mxu0 0.0
  %122 = vmatprep.subr.mxu0 0.0
  %123 = vmatpush1.msra.mxu0 0.0
  %124 = vmatprep.subr.mxu0 0.0
  %125 = vmatpush1.msra.mxu0 0.0
  %126 = vmatprep.subr.mxu0 0.0
  %127 = vmatpush1.msra.mxu0 0.0
  %128 = vmatprep.subr.mxu0 0.0
  %129 = vmatpush1.msra.mxu0 0.0
  %130 = vmatprep.subr.mxu0 0.0
  %131 = vmatpush1.msra.mxu0 0.0
  %132 = vmatprep.subr.mxu0 0.0
  %133 = vmatpush1.msra.mxu0 0.0
  %134 = vmatprep.subr.mxu0 0.0
  %135 = vmatpush1.msra.mxu0 0.0
  %136 = vmatprep.subr.mxu0 0.0
  %137 = vmatpush1.msra.mxu0 0.0
  %138 = vmatprep.subr.mxu0 0.0
  %139 = vmatpush1.msra.mxu0 0.0
  %140 = vmatprep.subr.mxu0 0.0
  %141 = vmatpush1.msra.mxu0 0.0
  %142 = vmatprep.subr.mxu0 0.0
  %143 = vmatpush1.msra.mxu0 0.0
  %144 = vmatprep.subr.mxu0 0.0
  %145 = vmatpush1.msra.mxu0 0.0
  %146 = vmatprep.subr.mxu0 0.0
  %147 = vmatpush1.msra.mxu0 %v39
  %148 = vmatprep.subr.mxu0 0.0
  %149 = vmatpush2.msra.mxu0 0.0
  %150 = vmatprep.subr.mxu0 0.0
  %151 = vmatpush2.msra.mxu0 0.0
  %152 = vmatprep.subr.mxu0 0.0
  %153 = vmatpush2.msra.mxu0 0.0
  %154 = vmatprep.subr.mxu0 0.0
  %155 = vmatpush2.msra.mxu0 0.0
  %156 = vmatprep.subr.mxu0 0.0
  %157 = vmatpush2.msra.mxu0 0.0
  %158 = vmatprep.subr.mxu0 0.0
  %159 = vmatpush2.msra.mxu0 0.0
  %160 = vmatprep.subr.mxu0 0.0
  %161 = vmatpush2.msra.mxu0 0.0
  %162 = vmatprep.subr.mxu0 0.0
  %163 = vmatpush2.msra.mxu0 0.0
  %164 = vmatprep.subr.mxu0 0.0
  %165 = vmatpush2.msra.mxu0 0.0
  %166 = vmatprep.subr.mxu0 0.0
  %167 = vmatpush2.msra.mxu0 0.0
  %168 = vmatprep.subr.mxu0 0.0
  %169 = vmatpush2.msra.mxu0 0.0
  %170 = vmatprep.subr.mxu0 0.0
  %171 = vmatpush2.msra.mxu0 0.0
  %172 = vmatprep.subr.mxu0 0.0
  %173 = vmatpush2.msra.mxu0 0.0
  %174 = vmatprep.subr.mxu0 0.0
  %175 = vmatpush2.msra.mxu0 0.0
  %176 = vmatprep.subr.mxu0 0.0
  %177 = vmatpush2.msra.mxu0 0.0
  %178 = vmatprep.subr.mxu0 0.0
  %179 = vmatpush2.msra.mxu0 0.0
  %180 = vmatprep.mubr.f32.mxu0 0.0
  %181 = vmatmul.mubr.f32.gmra.mxu0 %v42
  %v182 = vpop.f32.mrf.mxu0
  %v183 = vadd.f32 0.0, %v182
  %v184 = vpop.f32.mrf.mxu0
  %185 = vmatprep.mubr.f32.mxu0 0.0
  %186 = vmatmul.mubr.f32.gmra.mxu0 %v45
  %v187 = vpop.f32.mrf.mxu0
  %v188 = vadd.f32 0.0, %v187
  %v189 = vpop.f32.mrf.mxu0
  %190 = vmatprep.mubr.f32.mxu0 0.0
  %191 = vmatmul.mubr.f32.gmra.mxu0 %v48
  %v192 = vpop.f32.mrf.mxu0
  %v193 = vadd.f32 0.0, %v192
  %v194 = vpop.f32.mrf.mxu0
  %195 = vmatprep.mubr.f32.mxu0 0.0
  %196 = vmatmul.mubr.f32.gmra.mxu0 %v51
  %v197 = vpop.f32.mrf.mxu0
  %v198 = vadd.f32 0.0, %v197
  %v199 = vpop.f32.mrf.mxu0
  %200 = vmatprep.mubr.f32.mxu0 0.0
  %201 = vmatmul.mubr.f32.gmra.mxu0 %v54
  %v202 = vpop.f32.mrf.mxu0
  %v203 = vadd.f32 0.0, %v202
  %v204 = vpop.f32.mrf.mxu0
  %205 = vmatprep.mubr.f32.mxu0 0.0
  %206 = vmatmul.mubr.f32.gmra.mxu0 %v57
  %v207 = vpop.f32.mrf.mxu0
  %v208 = vadd.f32 0.0, %v207
  %v209 = vpop.f32.mrf.mxu0
  %210 = vmatprep.mubr.f32.mxu0 0.0
  %211 = vmatmul.mubr.f32.gmra.mxu0 %v60
  %v212 = vpop.f32.mrf.mxu0
  %v213 = vadd.f32 0.0, %v212
  %v214 = vpop.f32.mrf.mxu0
  %215 = vmatprep.mubr.f32.mxu0 0.0
  %216 = vmatmul.mubr.f32.gmra.mxu0 %v63
  %v217 = vpop.f32.mrf.mxu0
  %v218 = vadd.f32 0.0, %v217
  %v219 = vpop.f32.mrf.mxu0
  %220 = vmatprep.mubr.f32.mxu0 0.0
  %221 = vmatmul.mubr.f32.gmra.mxu0 %v66
  %v222 = vpop.f32.mrf.mxu0
  %v223 = vadd.f32 0.0, %v222
  %v224 = vpop.f32.mrf.mxu0
  %225 = vmatprep.mubr.f32.mxu0 0.0
  %226 = vmatmul.mubr.f32.gmra.mxu0 %v69
  %v227 = vpop.f32.mrf.mxu0
  %v228 = vadd.f32 0.0, %v227
  %v229 = vpop.f32.mrf.mxu0
  %230 = vmatprep.mubr.f32.mxu0 0.0
  %231 = vmatmul.mubr.f32.gmra.mxu0 %v72
  %v232 = vpop.f32.mrf.mxu0
  %v233 = vadd.f32 0.0, %v232
  %v234 = vpop.f32.mrf.mxu0
  %235 = vmatprep.mubr.f32.mxu0 0.0
  %236 = vmatmul.mubr.f32.gmra.mxu0 %v75
  %v237 = vpop.f32.mrf.mxu0
  %v238 = vadd.f32 0.0, %v237
  %v239 = vpop.f32.mrf.mxu0
  %240 = vmatprep.mubr.f32.mxu0 0.0
  %241 = vmatmul.mubr.f32.gmra.mxu0 %v78
  %v242 = vpop.f32.mrf.mxu0
  %v243 = vadd.f32 0.0, %v242
  %v244 = vpop.f32.mrf.mxu0
  %245 = vmatprep.mubr.f32.mxu0 0.0
  %246 = vmatmul.mubr.f32.gmra.mxu0 %v81
  %v247 = vpop.f32.mrf.mxu0
  %v248 = vadd.f32 0.0, %v247
  %v249 = vpop.f32.mrf.mxu0
  %250 = vmatprep.mubr.f32.mxu0 0.0
  %251 = vmatmul.mubr.f32.gmra.mxu0 %v84
  %v252 = vpop.f32.mrf.mxu0
  %v253 = vadd.f32 0.0, %v252
  %v254 = vpop.f32.mrf.mxu0
  %255 = vmatprep.mubr.f32.mxu0 0.0
  %256 = vmatmul.mubr.f32.gmra.mxu0 %v87
  %v257 = vpop.f32.mrf.mxu0
  %v258 = vadd.f32 0.0, %v257
  %v259 = vpop.f32.mrf.mxu0
  %260 = vmatprep.mubr.f32.mxu0 0.0
  %261 = vmatmul.mubr.f32.gmra.mxu0 %v90
  %v262 = vpop.f32.mrf.mxu0
  %v263 = vadd.f32 0.0, %v262
  %v264 = vpop.f32.mrf.mxu0
  %265 = vmatprep.mubr.f32.mxu0 0.0
  %266 = vmatmul.mubr.f32.gmra.mxu0 %v93
  %v267 = vpop.f32.mrf.mxu0
  %v268 = vadd.f32 0.0, %v267
  %v269 = vpop.f32.mrf.mxu0
  %270 = vmatprep.mubr.f32.mxu0 0.0
  %271 = vmatmul.mubr.f32.gmra.mxu0 %v96
  %v272 = vpop.f32.mrf.mxu0
  %v273 = vadd.f32 0.0, %v272
  %v274 = vpop.f32.mrf.mxu0
  %275 = vmatprep.mubr.f32.mxu0 0.0
  %276 = vmatmul.mubr.f32.gmra.mxu0 %v99
  %v277 = vpop.f32.mrf.mxu0
  %v278 = vadd.f32 0.0, %v277
  %v279 = vpop.f32.mrf.mxu0
  %280 = vmatprep.mubr.f32.mxu0 0.0
  %281 = vmatmul.mubr.f32.gmra.mxu0 %v102
  %v282 = vpop.f32.mrf.mxu0
  %v283 = vadd.f32 0.0, %v282
  %v284 = vpop.f32.mrf.mxu0
  %285 = vmatprep.mubr.f32.mxu0 0.0
  %286 = vmatmul.mubr.f32.gmra.mxu0 %v105
  %v287 = vpop.f32.mrf.mxu0
  %v288 = vadd.f32 0.0, %v287
  %v289 = vpop.f32.mrf.mxu0
  %290 = vmatprep.mubr.f32.mxu0 0.0
  %291 = vmatmul.mubr.f32.gmra.mxu0 %v108
  %v292 = vpop.f32.mrf.mxu0
  %v293 = vadd.f32 0.0, %v292
  %v294 = vpop.f32.mrf.mxu0
  %295 = vmatprep.mubr.f32.mxu0 0.0
  %296 = vmatmul.mubr.f32.gmra.mxu0 %v111
  %v297 = vpop.f32.mrf.mxu0
  %v298 = vadd.f32 0.0, %v297
  %v299 = vpop.f32.mrf.mxu0
  %300 = vmatprep.mubr.f32.mxu0 0.0
  %301 = vmatmul.mubr.f32.gmra.mxu0 %v114
  %v302 = vpop.f32.mrf.mxu0
  %v303 = vadd.f32 0.0, %v302
  %v304 = vpop.f32.mrf.mxu0
  %305 = vdwg.mxu0
  %v306 = vmax.f32 %v183, 0.0
  %v307 = vmax.f32 %v188, 0.0
  %v308 = vmax.f32 %v193, 0.0
  %v309 = vmax.f32 %v198, 0.0
  %v310 = vmax.f32 %v203, 0.0
  %v311 = vmax.f32 %v208, 0.0
  %v312 = vmax.f32 %v213, 0.0
  %v313 = vmax.f32 %v218, 0.0
  %v314 = vmax.f32 %v223, 0.0
  %v315 = vmax.f32 %v228, 0.0
  %v316 = vmax.f32 %v233, 0.0
  %v317 = vmax.f32 %v238, 0.0
  %v318 = vmax.f32 %v243, 0.0
  %v319 = vmax.f32 %v248, 0.0
  %v320 = vmax.f32 %v253, 0.0
  %v321 = vmax.f32 %v258, 0.0
  %v322 = vmax.f32 %v263, 0.0
  %v323 = vmax.f32 %v268, 0.0
  %v324 = vmax.f32 %v273, 0.0
  %v325 = vmax.f32 %v278, 0.0
  %v326 = vmax.f32 %v283, 0.0
  %v327 = vmax.f32 %v288, 0.0
  %v328 = vmax.f32 %v293, 0.0
  %v329 = vmax.f32 %v298, 0.0
  %v330 = vmax.f32 %v303, 0.0
  %v331 = vld [vmem:[%s2] sm:$0xff]
  %v332 = vld [vmem:[%s2 + $0x8] sm:$0xff]
  %v333 = vld [vmem:[%s2 + $0x10] sm:$0xff]
  %v334 = vld [vmem:[%s2 + $0x18] sm:$0xff]
  %v335 = vld [vmem:[%s2 + $0x20] sm:$0xff]
  %v336 = vld [vmem:[%s2 + $0x28] sm:$0xff]
  %v337 = vld [vmem:[%s2 + $0x30] sm:$0xff]
  %v338 = vld [vmem:[%s2 + $0x38] sm:$0xff]
  %v339 = vld [vmem:[%s2 + $0x40] sm:$0xff]
  %v340 = vld [vmem:[%s2 + $0x48] sm:$0xff]
  %v341 = vld [vmem:[%s2 + $0x50] sm:$0xff]
  %v342 = vld [vmem:[%s2 + $0x58] sm:$0xff]
  %v343 = vld [vmem:[%s2 + $0x60] sm:$0xff]
  %v344 = vld [vmem:[%s2 + $0x68] sm:$0xff]
  %v345 = vld [vmem:[%s2 + $0x70] sm:$0xff]
  %v346 = vld [vmem:[%s2 + $0x78] sm:$0xff]
  %347 = vmatprep.subr.mxu0 0.0
  %348 = vmatpush1.msra.mxu0 %v346
  %349 = vmatprep.subr.mxu0 0.0
  %350 = vmatpush1.msra.mxu0 %v345
  %351 = vmatprep.subr.mxu0 0.0
  %352 = vmatpush1.msra.mxu0 %v344
  %353 = vmatprep.subr.mxu0 0.0
  %354 = vmatpush1.msra.mxu0 %v343
  %355 = vmatprep.subr.mxu0 0.0
  %356 = vmatpush1.msra.mxu0 %v342
  %357 = vmatprep.subr.mxu0 0.0
  %358 = vmatpush1.msra.mxu0 %v341
  %359 = vmatprep.subr.mxu0 0.0
  %360 = vmatpush1.msra.mxu0 %v340
  %361 = vmatprep.subr.mxu0 0.0
  %362 = vmatpush1.msra.mxu0 %v339
  %363 = vmatprep.subr.mxu0 0.0
  %364 = vmatpush1.msra.mxu0 %v338
  %365 = vmatprep.subr.mxu0 0.0
  %366 = vmatpush1.msra.mxu0 %v337
  %367 = vmatprep.subr.mxu0 0.0
  %368 = vmatpush1.msra.mxu0 %v336
  %369 = vmatprep.subr.mxu0 0.0
  %370 = vmatpush1.msra.mxu0 %v335
  %371 = vmatprep.subr.mxu0 0.0
  %372 = vmatpush1.msra.mxu0 %v334
  %373 = vmatprep.subr.mxu0 0.0
  %374 = vmatpush1.msra.mxu0 %v333
  %375 = vmatprep.subr.mxu0 0.0
  %376 = vmatpush1.msra.mxu0 %v332
  %377 = vmatprep.subr.mxu0 0.0
  %378 = vmatpush1.msra.mxu0 %v331
  %379 = vmatprep.subr.mxu0 0.0
  %380 = vmatpush2.msra.mxu0 0.0
  %381 = vmatprep.subr.mxu0 0.0
  %382 = vmatpush2.msra.mxu0 0.0
  %383 = vmatprep.subr.mxu0 0.0
  %384 = vmatpush2.msra.mxu0 0.0
  %385 = vmatprep.subr.mxu0 0.0
  %386 = vmatpush2.msra.mxu0 0.0
  %387 = vmatprep.subr.mxu0 0.0
  %388 = vmatpush2.msra.mxu0 0.0
  %389 = vmatprep.subr.mxu0 0.0
  %390 = vmatpush2.msra.mxu0 0.0
  %391 = vmatprep.subr.mxu0 0.0
  %392 = vmatpush2.msra.mxu0 0.0
  %393 = vmatprep.subr.mxu0 0.0
  %394 = vmatpush2.msra.mxu0 0.0
  %395 = vmatprep.subr.mxu0 0.0
  %396 = vmatpush2.msra.mxu0 0.0
  %397 = vmatprep.subr.mxu0 0.0
  %398 = vmatpush2.msra.mxu0 0.0
  %399 = vmatprep.subr.mxu0 0.0
  %400 = vmatpush2.msra.mxu0 0.0
  %401 = vmatprep.subr.mxu0 0.0
  %402 = vmatpush2.msra.mxu0 0.0
  %403 = vmatprep.subr.mxu0 0.0
  %404 = vmatpush2.msra.mxu0 0.0
  %405 = vmatprep.subr.mxu0 0.0
  %406 = vmatpush2.msra.mxu0 0.0
  %407 = vmatprep.subr.mxu0 0.0
  %408 = vmatpush2.msra.mxu0 0.0
  %409 = vmatprep.subr.mxu0 0.0
  %410 = vmatpush2.msra.mxu0 0.0
  %411 = vmatprep.mubr.f32.mxu0 0.0
  %412 = vmatmul.mubr.f32.gmra.mxu0 %v306
  %v413 = vpop.f32.mrf.mxu0
  %v414 = vadd.f32 0.0, %v413
  %v415 = vpop.f32.mrf.mxu0
  %416 = vmatprep.mubr.f32.mxu0 0.0
  %417 = vmatmul.mubr.f32.gmra.mxu0 %v307
  %v418 = vpop.f32.mrf.mxu0
  %v419 = vadd.f32 0.0, %v418
  %v420 = vpop.f32.mrf.mxu0
  %421 = vmatprep.mubr.f32.mxu0 0.0
  %422 = vmatmul.mubr.f32.gmra.mxu0 %v308
  %v423 = vpop.f32.mrf.mxu0
  %v424 = vadd.f32 0.0, %v423
  %v425 = vpop.f32.mrf.mxu0
  %426 = vmatprep.mubr.f32.mxu0 0.0
  %427 = vmatmul.mubr.f32.gmra.mxu0 %v309
  %v428 = vpop.f32.mrf.mxu0
  %v429 = vadd.f32 0.0, %v428
  %v430 = vpop.f32.mrf.mxu0
  %431 = vmatprep.mubr.f32.mxu0 0.0
  %432 = vmatmul.mubr.f32.gmra.mxu0 %v310
  %v433 = vpop.f32.mrf.mxu0
  %v434 = vadd.f32 0.0, %v433
  %v435 = vpop.f32.mrf.mxu0
  %436 = vmatprep.mubr.f32.mxu0 0.0
  %437 = vmatmul.mubr.f32.gmra.mxu0 %v311
  %v438 = vpop.f32.mrf.mxu0
  %v439 = vadd.f32 0.0, %v438
  %v440 = vpop.f32.mrf.mxu0
  %441 = vmatprep.mubr.f32.mxu0 0.0
  %442 = vmatmul.mubr.f32.gmra.mxu0 %v312
  %v443 = vpop.f32.mrf.mxu0
  %v444 = vadd.f32 0.0, %v443
  %v445 = vpop.f32.mrf.mxu0
  %446 = vmatprep.mubr.f32.mxu0 0.0
  %447 = vmatmul.mubr.f32.gmra.mxu0 %v313
  %v448 = vpop.f32.mrf.mxu0
  %v449 = vadd.f32 0.0, %v448
  %v450 = vpop.f32.mrf.mxu0
  %451 = vmatprep.mubr.f32.mxu0 0.0
  %452 = vmatmul.mubr.f32.gmra.mxu0 %v314
  %v453 = vpop.f32.mrf.mxu0
  %v454 = vadd.f32 0.0, %v453
  %v455 = vpop.f32.mrf.mxu0
  %456 = vmatprep.mubr.f32.mxu0 0.0
  %457 = vmatmul.mubr.f32.gmra.mxu0 %v315
  %v458 = vpop.f32.mrf.mxu0
  %v459 = vadd.f32 0.0, %v458
  %v460 = vpop.f32.mrf.mxu0
  %461 = vmatprep.mubr.f32.mxu0 0.0
  %462 = vmatmul.mubr.f32.gmra.mxu0 %v316
  %v463 = vpop.f32.mrf.mxu0
  %v464 = vadd.f32 0.0, %v463
  %v465 = vpop.f32.mrf.mxu0
  %466 = vmatprep.mubr.f32.mxu0 0.0
  %467 = vmatmul.mubr.f32.gmra.mxu0 %v317
  %v468 = vpop.f32.mrf.mxu0
  %v469 = vadd.f32 0.0, %v468
  %v470 = vpop.f32.mrf.mxu0
  %471 = vmatprep.mubr.f32.mxu0 0.0
  %472 = vmatmul.mubr.f32.gmra.mxu0 %v318
  %v473 = vpop.f32.mrf.mxu0
  %v474 = vadd.f32 0.0, %v473
  %v475 = vpop.f32.mrf.mxu0
  %476 = vmatprep.mubr.f32.mxu0 0.0
  %477 = vmatmul.mubr.f32.gmra.mxu0 %v319
  %v478 = vpop.f32.mrf.mxu0
  %v479 = vadd.f32 0.0, %v478
  %v480 = vpop.f32.mrf.mxu0
  %481 = vmatprep.mubr.f32.mxu0 0.0
  %482 = vmatmul.mubr.f32.gmra.mxu0 %v320
  %v483 = vpop.f32.mrf.mxu0
  %v484 = vadd.f32 0.0, %v483
  %v485 = vpop.f32.mrf.mxu0
  %486 = vmatprep.mubr.f32.mxu0 0.0
  %487 = vmatmul.mubr.f32.gmra.mxu0 %v321
  %v488 = vpop.f32.mrf.mxu0
  %v489 = vadd.f32 0.0, %v488
  %v490 = vpop.f32.mrf.mxu0
  %491 = vmatprep.mubr.f32.mxu0 0.0
  %492 = vmatmul.mubr.f32.gmra.mxu0 %v322
  %v493 = vpop.f32.mrf.mxu0
  %v494 = vadd.f32 0.0, %v493
  %v495 = vpop.f32.mrf.mxu0
  %496 = vmatprep.mubr.f32.mxu0 0.0
  %497 = vmatmul.mubr.f32.gmra.mxu0 %v323
  %v498 = vpop.f32.mrf.mxu0
  %v499 = vadd.f32 0.0, %v498
  %v500 = vpop.f32.mrf.mxu0
  %501 = vmatprep.mubr.f32.mxu0 0.0
  %502 = vmatmul.mubr.f32.gmra.mxu0 %v324
  %v503 = vpop.f32.mrf.mxu0
  %v504 = vadd.f32 0.0, %v503
  %v505 = vpop.f32.mrf.mxu0
  %506 = vmatprep.mubr.f32.mxu0 0.0
  %507 = vmatmul.mubr.f32.gmra.mxu0 %v325
  %v508 = vpop.f32.mrf.mxu0
  %v509 = vadd.f32 0.0, %v508
  %v510 = vpop.f32.mrf.mxu0
  %511 = vmatprep.mubr.f32.mxu0 0.0
  %512 = vmatmul.mubr.f32.gmra.mxu0 %v326
  %v513 = vpop.f32.mrf.mxu0
  %v514 = vadd.f32 0.0, %v513
  %v515 = vpop.f32.mrf.mxu0
  %516 = vmatprep.mubr.f32.mxu0 0.0
  %517 = vmatmul.mubr.f32.gmra.mxu0 %v327
  %v518 = vpop.f32.mrf.mxu0
  %v519 = vadd.f32 0.0, %v518
  %v520 = vpop.f32.mrf.mxu0
  %521 = vmatprep.mubr.f32.mxu0 0.0
  %522 = vmatmul.mubr.f32.gmra.mxu0 %v328
  %v523 = vpop.f32.mrf.mxu0
  %v524 = vadd.f32 0.0, %v523
  %v525 = vpop.f32.mrf.mxu0
  %526 = vmatprep.mubr.f32.mxu0 0.0
  %527 = vmatmul.mubr.f32.gmra.mxu0 %v329
  %v528 = vpop.f32.mrf.mxu0
  %v529 = vadd.f32 0.0, %v528
  %v530 = vpop.f32.mrf.mxu0
  %531 = vmatprep.mubr.f32.mxu0 0.0
  %532 = vmatmul.mubr.f32.gmra.mxu0 %v330
  %v533 = vpop.f32.mrf.mxu0
  %v534 = vadd.f32 0.0, %v533
  %v535 = vpop.f32.mrf.mxu0
  %536 = vdwg.mxu0
  %537 = vst [vmem:[%s3] sm:$0xff] %v414
  %538 = vst [vmem:[%s3 + $0x8] sm:$0xff] %v419
  %539 = vst [vmem:[%s3 + $0x10] sm:$0xff] %v424
  %540 = vst [vmem:[%s3 + $0x18] sm:$0xff] %v429
  %541 = vst [vmem:[%s3 + $0x20] sm:$0xff] %v434
  %542 = vst [vmem:[%s3 + $0x28] sm:$0xff] %v439
  %543 = vst [vmem:[%s3 + $0x30] sm:$0xff] %v444
  %544 = vst [vmem:[%s3 + $0x38] sm:$0xff] %v449
  %545 = vst [vmem:[%s3 + $0x40] sm:$0xff] %v454
  %546 = vst [vmem:[%s3 + $0x48] sm:$0xff] %v459
  %547 = vst [vmem:[%s3 + $0x50] sm:$0xff] %v464
  %548 = vst [vmem:[%s3 + $0x58] sm:$0xff] %v469
  %549 = vst [vmem:[%s3 + $0x60] sm:$0xff] %v474
  %550 = vst [vmem:[%s3 + $0x68] sm:$0xff] %v479
  %551 = vst [vmem:[%s3 + $0x70] sm:$0xff] %v484
  %552 = vst [vmem:[%s3 + $0x78] sm:$0xff] %v489
  %553 = vst [vmem:[%s3 + $0x80] sm:$0xff] %v494
  %554 = vst [vmem:[%s3 + $0x88] sm:$0xff] %v499
  %555 = vst [vmem:[%s3 + $0x90] sm:$0xff] %v504
  %556 = vst [vmem:[%s3 + $0x98] sm:$0xff] %v509
  %557 = vst [vmem:[%s3 + $0xa0] sm:$0xff] %v514
  %558 = vst [vmem:[%s3 + $0xa8] sm:$0xff] %v519
  %559 = vst [vmem:[%s3 + $0xb0] sm:$0xff] %v524
  %560 = vst [vmem:[%s3 + $0xb8] sm:$0xff] %v529
  %561 = vst [vmem:[%s3 + $0xc0] sm:$0xff] %v534
  // Predicated region
  $region14: #{net_forward.1} parent=0 // pred_check
    _
  $region15: #{net_forward.1} parent=0 // pred_check_branch
    %563 = sbr.rel (0) target = $region17
  $region16: #{net_forward.1} parent=0 // pred_region
    _
  $region17: #{net_forward.1} parent=0 // pred_fallthru
    _
  // Predicated region
  $region18: #{net_forward.1} parent=0 // pred_check
    _
  $region19: #{net_forward.1} parent=0 // pred_check_branch
    %565 = sbr.rel (0) target = $region21
  $region20: #{net_forward.1} parent=0 // pred_region
    _
  $region21: #{net_forward.1} parent=0 // pred_fallthru
    _

</llo_original>
